<compile_context>
chip_gen: v7x
topology: tpu7x:2x2x1
jax: 0.10.0
libtpu: 0.0.40
codegen_flags: <defaults>
</compile_context>

<pallas_src>
import functools
import math

import jax
import jax.numpy as jnp
from jax.experimental import pallas as pl
from jax.experimental.pallas import tpu as pltpu


_EPS_PROJ_F32 = 4e-3            # geoopt ball-projection eps for float32
_ARTANH_CLIP = 1.0 - 1e-7       # geoopt artanh domain clamp
_NORM_MIN = 1e-15               # geoopt clamp_min on norms
_FUSED_MAX_NODES = 256          # below this: single fused kernel (launch-bound regime)
_SINGLE_BUFFER_MIN_BYTES = 4 << 20   # single-buffer grid-constant operands above this
_H_RESIDENT_MAX_BYTES = 8 << 20      # keep h VMEM-resident in kernel 2 if <= this


def _round_up(v: int, m: int) -> int:
    return ((v + m - 1) // m) * m


def _cdiv(a: int, b: int) -> int:
    return (a + b - 1) // b


def _vmem_capacity_bytes() -> int:
    try:
        return int(pltpu.get_tpu_info().vmem_capacity_bytes)
    except Exception:
        return 64 << 20     # v7x per-TensorCore VMEM; conservative for v5e/v6e (128 MiB)


def _const_block_spec(block_shape, index_map, nbytes):
    """BlockSpec for a grid-constant operand; single-buffer it when it is large.

    Default double-buffering would allocate 2x the full operand in VMEM for no benefit
    (its block index never changes).  Only engaged above 4 MiB, so small problems never
    depend on pipeline_mode support.
    """
    if nbytes >= _SINGLE_BUFFER_MIN_BYTES and hasattr(pl, "Buffered"):
        try:
            return pl.BlockSpec(block_shape, index_map, pipeline_mode=pl.Buffered(1))
        except TypeError:       # older jax without pipeline_mode kwarg
            pass
    return pl.BlockSpec(block_shape, index_map)


# --------------------------------------------------------------------------- #
# Shared in-kernel math                                                         #
# --------------------------------------------------------------------------- #
def _hyperbolic_row_scale(x_f32, mx_f32, sqrt_c):
    """Per-row scale s so that project(mobius_matvec(W, x)) == mx * s.

    All reductions/divides are [rows, 1]; the only full-tile op left to the caller is a
    single multiply (mx * s), replacing two full-tile divides + one extra full reduce.
    """
    x_sq = jnp.sum(x_f32 * x_f32, axis=-1, keepdims=True)
    mx_sq = jnp.sum(mx_f32 * mx_f32, axis=-1, keepdims=True)
    x_norm = jnp.sqrt(jnp.maximum(x_sq, _NORM_MIN * _NORM_MIN))
    mx_norm = jnp.sqrt(jnp.maximum(mx_sq, _NORM_MIN * _NORM_MIN))

    a = jnp.minimum(sqrt_c * x_norm, _ARTANH_CLIP)          # artanh domain clamp
    artanh = 0.5 * jnp.log((1.0 + a) / (1.0 - a))           # [rows, 1] only

    ratio = mx_norm * pl.reciprocal(x_norm, approx=True)
    scale = jnp.tanh(ratio * artanh) * pl.reciprocal(sqrt_c * mx_norm, approx=True)
    scale = jnp.where(mx_sq == 0.0, 0.0, scale)              # all-zero mx rows -> origin

    # geoopt project(): ||mx * scale|| == scale * mx_norm (scale >= 0), so the ball
    # projection folds into the same per-row scale.
    maxnorm = (1.0 - _EPS_PROJ_F32) / sqrt_c
    hn = jnp.maximum(scale * mx_norm, _NORM_MIN)
    scale = scale * jnp.where(hn > maxnorm,
                              maxnorm * pl.reciprocal(hn, approx=True), 1.0)
    return scale


def _projx_scale(y_f32, sqrt_c):
    """Per-row scale implementing geoopt projx (ball-radius clip)."""
    maxnorm = (1.0 - _EPS_PROJ_F32) / sqrt_c
    yn = jnp.sqrt(jnp.maximum(jnp.sum(y_f32 * y_f32, axis=-1, keepdims=True),
                              _NORM_MIN * _NORM_MIN))
    return jnp.where(yn > maxnorm, maxnorm * pl.reciprocal(yn, approx=True), 1.0)


# --------------------------------------------------------------------------- #
# Kernel A: fused small-graph path (one grid point, everything in VMEM)        #
# --------------------------------------------------------------------------- #
def _fused_kernel(x_ref, adj_ref, w_ref, b_ref, o_ref, *, sqrt_c, prop_dtype):
    x = x_ref[...]
    mx = jnp.dot(x, w_ref[...], preferred_element_type=jnp.float32)
    scale = _hyperbolic_row_scale(x.astype(jnp.float32), mx, sqrt_c)
    h = mx * scale                                           # [N, Fout] f32

    a = adj_ref[...]
    if a.dtype != prop_dtype:
        a = a.astype(prop_dtype)
    y = jnp.dot(a, h.astype(prop_dtype), preferred_element_type=jnp.float32)
    y = y * _projx_scale(y, sqrt_c) + b_ref[...].astype(jnp.float32)
    o_ref[...] = y.astype(o_ref.dtype)


# --------------------------------------------------------------------------- #
# Kernel B1: hyperbolic linear map (row-tiled)                                  #
# --------------------------------------------------------------------------- #
def _mobius_kernel(x_ref, w_ref, h_ref, *, sqrt_c):
    x = x_ref[...]
    mx = jnp.dot(x, w_ref[...], preferred_element_type=jnp.float32)
    scale = _hyperbolic_row_scale(x.astype(jnp.float32), mx, sqrt_c)
    h_ref[...] = (mx * scale).astype(h_ref.dtype)
# TODO(synk): for very large Fin*Fout (f32 4096-class weights on v7x's 64 MiB VMEM) the
#             weight should be Fout-tiled with a two-pass row-norm instead of being held
#             fully resident here.


# --------------------------------------------------------------------------- #
# Kernel B2: y = adj @ h, rows parallel, K reduction last, f32 accumulator;    #
# projx + bias fused into the finalize branch.                                 #
# --------------------------------------------------------------------------- #
def _propagate_kernel(adj_ref, h_ref, b_ref, o_ref, acc_ref, *,
                      sqrt_c, n_valid_k, tile_k, mask_k, h_is_resident, prop_dtype):
    k = pl.program_id(1)

    @pl.when(k == 0)
    def _():
        acc_ref[...] = jnp.zeros_like(acc_ref)

    a = adj_ref[...]
    if mask_k:  # static python bool: only emitted when tile_k does not divide N
        col = k * tile_k + jax.lax.broadcasted_iota(jnp.int32, a.shape, 1)
        a = jnp.where(col < n_valid_k, a, jnp.zeros_like(a))
    if a.dtype != prop_dtype:
        a = a.astype(prop_dtype)            # in-VMEM cast: bf16 MXU path, no host copy

    if h_is_resident:
        h = h_ref[pl.ds(pl.multiple_of(k * tile_k, tile_k), tile_k), :]
    else:
        h = h_ref[...]

    acc_ref[...] += jnp.dot(a, h, preferred_element_type=jnp.float32)

    @pl.when(k == pl.num_programs(1) - 1)
    def _():
        y = acc_ref[...]
        y = y * _projx_scale(y, sqrt_c) + b_ref[...].astype(jnp.float32)
        o_ref[...] = y.astype(o_ref.dtype)


# --------------------------------------------------------------------------- #
# Wrapper                                                                       #
# --------------------------------------------------------------------------- #
def hyperbolic_graph_convolution(x, adj, weight, bias=None, *, curvature=1.0,
                                 compute_dtype=None, tile_rows=None, tile_k=None,
                                 h_resident=None):
    """Poincare-ball graph convolution: project(mobius_matvec) -> adj@h -> projx -> +bias.

    x: [N, Fin], adj: [N, N] dense, weight: [Fin, Fout], bias: [Fout] | None -> [N, Fout]

    compute_dtype: dtype of the MXU operands.  None (default) keeps x/W in their own
    dtype for the hyperbolic map (norm accuracy) and uses bf16 operands for the
    adjacency propagation (accumulation is always f32).  Pass jnp.float32 to force a
    full-precision propagation.  Pass adj pre-cast to bf16 when it is reused across
    layers to also halve its HBM reads (the dominant traffic).
    """
    N, Fin = x.shape
    Fout = weight.shape[1]
    assert adj.shape == (N, N)
    out_dtype = x.dtype
    sqrt_c = float(math.sqrt(float(curvature)))
    f32 = jnp.dtype(jnp.float32)

    if compute_dtype is not None:
        mob_dtype = prop_dtype = jnp.dtype(compute_dtype)
    else:
        mob_dtype = jnp.dtype(x.dtype)        # keep norms in input precision
        prop_dtype = jnp.dtype(jnp.bfloat16)  # bf16 operands for the memory-bound matmul

    b_row = jnp.zeros((1, Fout), f32)
    if bias is not None:
        b_row = bias.reshape(1, Fout).astype(f32)

    x_c = x if x.dtype == mob_dtype else x.astype(mob_dtype)
    w_c = weight if weight.dtype == mob_dtype else weight.astype(mob_dtype)

    # -------- tiny graphs: one fused kernel (launch/DMA overhead dominates) --------
    if N <= _FUSED_MAX_NODES and tile_rows is None and tile_k is None:
        # Single grid point -> only one TensorCore on v7x; accepted at this size
        # (the win from dropping the h HBM round trip + second launch is larger).
        pdt = prop_dtype if compute_dtype is not None else f32
        kern = functools.partial(_fused_kernel, sqrt_c=sqrt_c, prop_dtype=pdt)
        return pl.pallas_call(
            kern,
            out_shape=jax.ShapeDtypeStruct((N, Fout), out_dtype),
            grid_spec=pltpu.PrefetchScalarGridSpec(
                num_scalar_prefetch=0,
                grid=(1,),
                in_specs=[pl.BlockSpec((N, Fin), lambda i: (0, 0)),
                          pl.BlockSpec((N, N), lambda i: (0, 0)),
                          pl.BlockSpec((Fin, Fout), lambda i: (0, 0)),
                          pl.BlockSpec((1, Fout), lambda i: (0, 0))],
                out_specs=pl.BlockSpec((N, Fout), lambda i: (0, 0)),
            ),
            compiler_params=pltpu.CompilerParams(dimension_semantics=("arbitrary",)),
        )(x_c, adj, w_c, b_row)

    # -------- general path: row-tiled Mobius kernel + tiled adjacency matmul --------
    vmem_cap = _vmem_capacity_bytes()
    Fout_p = _round_up(Fout, 128)                 # lane-dense h / y columns

    # Adjacency tile plan (feedback: >= 512 rows, 1024-2048 reduction columns).
    tm = int(tile_rows) if tile_rows is not None else 512
    tk = int(tile_k) if tile_k is not None else 2048
    tm = min(tm, N)
    tk = min(tk, N)
    if tm < N:
        tm = max(8, (tm // 8) * 8)                # (8,128) tiling rule
    if tk < N:
        tk = max(128, (tk // 128) * 128)

    gm, gk = _cdiv(N, tm), _cdiv(N, tk)
    Nh = gk * tk                   # h row count; > N only when tk does not divide N
    mask_k = Nh != N               # ragged adj K-edge masked inside the kernel
                                   # (the adjacency itself is never padded on the host)

    # ---- kernel B1: hyperbolic linear map, row tiles ----
    tm1 = min(256, Nh)
    if tm1 < Nh:
        tm1 = max(8, (tm1 // 8) * 8)
    x_in = x_c
    if Nh > N:   # zero rows so the padded h rows are exactly 0 (never garbage)
        x_in = jnp.zeros((Nh, Fin), mob_dtype).at[:N].set(x_c)

    w_p = (jnp.zeros((Fin, Fout_p), mob_dtype).at[:, :Fout].set(w_c)
           if Fout_p != Fout else w_c)
    b_p = (jnp.zeros((1, Fout_p), f32).at[:, :Fout].set(b_row)
           if Fout_p != Fout else b_row)

    w_bytes = Fin * Fout_p * mob_dtype.itemsize
    vmem1 = (2 * tm1 * Fin * mob_dtype.itemsize + 2 * w_bytes
             + 2 * tm1 * Fout_p * prop_dtype.itemsize + (8 << 20))
    mob = functools.partial(_mobius_kernel, sqrt_c=sqrt_c)
    h = pl.pallas_call(
        mob,
        out_shape=jax.ShapeDtypeStruct((Nh, Fout_p), prop_dtype),
        grid_spec=pltpu.PrefetchScalarGridSpec(
            num_scalar_prefetch=0,
            grid=(_cdiv(Nh, tm1),),
            in_specs=[pl.BlockSpec((tm1, Fin), lambda i: (i, 0)),
                      _const_block_spec((Fin, Fout_p), lambda i: (0, 0), w_bytes)],
            out_specs=pl.BlockSpec((tm1, Fout_p), lambda i: (i, 0)),
        ),
        compiler_params=pltpu.CompilerParams(
            dimension_semantics=("parallel",),
            vmem_limit_bytes=int(min(max(vmem1, 32 << 20), vmem_cap - (2 << 20)))),
    )(x_in, w_p)

    # ---- kernel B2: y = adj @ h, projx + bias in the finalize branch ----
    h_bytes = Nh * Fout_p * prop_dtype.itemsize
    if h_resident is None:
        h_resident = h_bytes <= min(_H_RESIDENT_MAX_BYTES, vmem_cap // 8)
    if h_resident:
        h_spec = _const_block_spec((Nh, Fout_p), lambda i, k: (0, 0), h_bytes)
        h_block_bytes = h_bytes
    else:
        h_spec = pl.BlockSpec((tk, Fout_p), lambda i, k: (k, 0))
        h_block_bytes = tk * Fout_p * prop_dtype.itemsize

    adj_item = jnp.dtype(adj.dtype).itemsize
    vmem2 = (2 * tm * tk * adj_item                         # adj double buffer
             + 2 * h_block_bytes                            # h (resident: fetched once)
             + 2 * tm * Fout_p * jnp.dtype(out_dtype).itemsize
             + tm * Fout_p * 4                              # f32 accumulator scratch
             + tm * tk * prop_dtype.itemsize                # in-kernel cast / mask temps
             + (8 << 20))

    prop = functools.partial(
        _propagate_kernel, sqrt_c=sqrt_c, n_valid_k=N, tile_k=tk, mask_k=mask_k,
        h_is_resident=bool(h_resident), prop_dtype=prop_dtype)

    # NOTE: if an xprof trace shows DMA gaps at k-step boundaries, bump the adj spec to
    # pipeline_mode=pl.Buffered(3) (measure first).
    y = pl.pallas_call(
        prop,
        out_shape=jax.ShapeDtypeStruct((N, Fout_p), out_dtype),
        grid_spec=pltpu.PrefetchScalarGridSpec(
            num_scalar_prefetch=0,
            grid=(gm, gk),
            in_specs=[pl.BlockSpec((tm, tk), lambda i, k: (i, k)),   # adj, un-padded
                      h_spec,
                      pl.BlockSpec((1, Fout_p), lambda i, k: (0, 0))],
            out_specs=pl.BlockSpec((tm, Fout_p), lambda i, k: (i, 0)),
            scratch_shapes=[pltpu.VMEM((tm, Fout_p), jnp.float32)]),
        compiler_params=pltpu.CompilerParams(
            dimension_semantics=("parallel", "arbitrary"),
            vmem_limit_bytes=int(min(max(vmem2, 32 << 20), vmem_cap - (2 << 20)))),
    )(adj, h, b_p)

    return y if Fout_p == Fout else y[:, :Fout]


# --------------------------------------------------------------------------- #
# Pure-JAX reference mirroring the PyTorch/geoopt forward                       #
# --------------------------------------------------------------------------- #
def hyperbolic_graph_convolution_ref(x, adj, weight, bias=None, *, curvature=1.0):
    sqrt_c = math.sqrt(float(curvature))

    def project(y):
        maxnorm = (1.0 - _EPS_PROJ_F32) / sqrt_c
        n = jnp.maximum(jnp.sqrt(jnp.sum(y * y, axis=-1, keepdims=True)), _NORM_MIN)
        return jnp.where(n > maxnorm, y / n * maxnorm, y)

    mx = x @ weight
    x_norm = jnp.maximum(jnp.sqrt(jnp.sum(x * x, axis=-1, keepdims=True)), _NORM_MIN)
    mx_norm = jnp.maximum(jnp.sqrt(jnp.sum(mx * mx, axis=-1, keepdims=True)), _NORM_MIN)
    a = jnp.minimum(sqrt_c * x_norm, _ARTANH_CLIP)
    artanh = 0.5 * jnp.log((1.0 + a) / (1.0 - a))
    res = jnp.tanh(mx_norm / x_norm * artanh) * mx / (mx_norm * sqrt_c)
    res = jnp.where(jnp.all(mx == 0.0, axis=-1, keepdims=True), 0.0, res)
    h = project(res)            # mobius_matvec projects by default
    y = adj @ h                 # spmm with a dense adjacency
    y = project(y)              # projx
    if bias is not None:
        y = y + bias
    return y


if __name__ == "__main__":
    def make_problem(key, N, Fin, Fout):
        kx, kadj, kw, kb = jax.random.split(key, 4)
        xx = 0.1 * jax.random.normal(kx, (N, Fin), dtype=jnp.float32)
        a = jax.random.uniform(kadj, (N, N), dtype=jnp.float32)
        a = 0.5 * (a + a.T)
        aa = a / jnp.sum(a, axis=1, keepdims=True)      # row-normalized dense adjacency
        # reset_parameters: stdv = 1/sqrt(in_features); weight, bias ~ U(-stdv, stdv)
        stdv = 1.0 / math.sqrt(Fin)
        ww = jax.random.uniform(kw, (Fin, Fout), minval=-stdv, maxval=stdv,
                                dtype=jnp.float32)
        bb = jax.random.uniform(kb, (Fout,), minval=-stdv, maxval=stdv,
                                dtype=jnp.float32)
        return xx, aa, ww, bb

    key = jax.random.PRNGKey(0)
    k1, k2 = jax.random.split(key)

    # 1. tiny graph -> fused single-kernel path (f32 end to end).
    x, adj, w, b = make_problem(k1, 16, 32, 32)
    ref = hyperbolic_graph_convolution_ref(x, adj, w, b, curvature=1.0)
    out = jax.block_until_ready(hyperbolic_graph_convolution(x, adj, w, b, curvature=1.0))
    assert out.shape == ref.shape
    assert jnp.allclose(out, ref, atol=3e-3, rtol=3e-3), "fused path mismatch"

    # 2. larger graph -> two-kernel tiled path, f32 operands, ragged tiles:
    #    exercises the in-kernel K-edge mask, accumulator init/finalize and resident h.
    x, adj, w, b = make_problem(k2, 640, 64, 96)
    ref = hyperbolic_graph_convolution_ref(x, adj, w, b, curvature=1.0)
    out = jax.block_until_ready(
        hyperbolic_graph_convolution(x, adj, w, b, curvature=1.0,
                                     compute_dtype=jnp.float32,
                                     tile_rows=256, tile_k=256))
    assert out.shape == ref.shape
    assert jnp.allclose(out, ref, atol=3e-3, rtol=3e-3), "tiled f32 path mismatch"

    # 3. same graph, default bf16 propagation operands + K-streamed h (loose sanity).
    out_bf = jax.block_until_ready(
        hyperbolic_graph_convolution(x, adj, w, b, curvature=1.0,
                                     tile_rows=256, tile_k=256, h_resident=False))
    assert bool(jnp.all(jnp.isfinite(out_bf)))
    assert float(jnp.max(jnp.abs(out_bf - ref))) < 5e-2, "bf16 propagation sanity failed"

    print("KERNEL_OK")
</pallas_src>

<mosaic_0001>
module attributes {stable_mosaic.version = 11 : i64} {
  func.func @_fused_kernel(%arg0: i32, %arg1: memref<16x32xf32, #tpu.memory_space<vmem>>, %arg2: memref<16x16xf32, #tpu.memory_space<vmem>>, %arg3: memref<32x32xf32, #tpu.memory_space<vmem>>, %arg4: memref<1x32xf32, #tpu.memory_space<vmem>>, %arg5: memref<16x32xf32, #tpu.memory_space<vmem>>) attributes {dimension_semantics = [#tpu.dimension_semantics<arbitrary>], iteration_bounds = array<i64: 1>, scalar_prefetch = 0 : i64, scratch_operands = 0 : i64, tpu.core_type = #tpu.core_type<tc>, window_params = [{pipeline_mode = #tpu.pipeline_mode<synchronous>, transform_indices = @transform_0, window_bounds = array<i64: 16, 32>}, {pipeline_mode = #tpu.pipeline_mode<synchronous>, transform_indices = @transform_1, window_bounds = array<i64: 16, 16>}, {pipeline_mode = #tpu.pipeline_mode<synchronous>, transform_indices = @transform_2, window_bounds = array<i64: 32, 32>}, {pipeline_mode = #tpu.pipeline_mode<synchronous>, transform_indices = @transform_3, window_bounds = array<i64: 1, 32>}, {pipeline_mode = #tpu.pipeline_mode<synchronous>, transform_indices = @transform_4, window_bounds = array<i64: 16, 32>}]} {
    %c0 = arith.constant 0 : index
    %c0_0 = arith.constant 0 : index
    %0 = vector.load %arg1[%c0, %c0_0] : memref<16x32xf32, #tpu.memory_space<vmem>>, vector<16x32xf32>
    %c0_1 = arith.constant 0 : index
    %c0_2 = arith.constant 0 : index
    %1 = vector.load %arg3[%c0_1, %c0_2] : memref<32x32xf32, #tpu.memory_space<vmem>>, vector<32x32xf32>
    %cst = arith.constant dense<0.000000e+00> : vector<16x32xf32>
    %2 = tpu.matmul %0, %1, %cst {dimension_numbers = #tpu.dot_dimension_numbers<[1], [0], [0], [1], [0, 0, 1, 1], [], []>} : vector<16x32xf32>, vector<32x32xf32>, vector<16x32xf32> -> vector<16x32xf32>
    %3 = arith.mulf %0, %0 : vector<16x32xf32>
    %cst_3 = arith.constant dense<0.000000e+00> : vector<16xf32>
    %4 = vector.multi_reduction <add>, %3, %cst_3 [1] : vector<16x32xf32> to vector<16xf32>
    %5 = vector.shape_cast %4 : vector<16xf32> to vector<16x1xf32>
    %6 = arith.mulf %2, %2 : vector<16x32xf32>
    %cst_4 = arith.constant dense<0.000000e+00> : vector<16xf32>
    %7 = vector.multi_reduction <add>, %6, %cst_4 [1] : vector<16x32xf32> to vector<16xf32>
    %8 = vector.shape_cast %7 : vector<16xf32> to vector<16x1xf32>
    %cst_5 = arith.constant 1.000000e-30 : f32
    %9 = vector.broadcast %cst_5 : f32 to vector<16x1xf32>
    %10 = arith.maximumf %5, %9 : vector<16x1xf32>
    %11 = math.sqrt %10 : vector<16x1xf32>
    %cst_6 = arith.constant 1.000000e-30 : f32
    %12 = vector.broadcast %cst_6 : f32 to vector<16x1xf32>
    %13 = arith.maximumf %8, %12 : vector<16x1xf32>
    %14 = math.sqrt %13 : vector<16x1xf32>
    %cst_7 = arith.constant 1.000000e+00 : f32
    %15 = vector.broadcast %cst_7 : f32 to vector<16x1xf32>
    %16 = arith.mulf %15, %11 : vector<16x1xf32>
    %cst_8 = arith.constant 0.99999988 : f32
    %17 = vector.broadcast %cst_8 : f32 to vector<16x1xf32>
    %18 = arith.minimumf %16, %17 : vector<16x1xf32>
    %cst_9 = arith.constant 1.000000e+00 : f32
    %19 = vector.broadcast %cst_9 : f32 to vector<16x1xf32>
    %20 = arith.addf %19, %18 : vector<16x1xf32>
    %cst_10 = arith.constant 1.000000e+00 : f32
    %21 = vector.broadcast %cst_10 : f32 to vector<16x1xf32>
    %22 = arith.subf %21, %18 : vector<16x1xf32>
    %23 = arith.divf %20, %22 : vector<16x1xf32>
    %24 = math.log %23 : vector<16x1xf32>
    %cst_11 = arith.constant 5.000000e-01 : f32
    %25 = vector.broadcast %cst_11 : f32 to vector<16x1xf32>
    %26 = arith.mulf %25, %24 : vector<16x1xf32>
    %27 = tpu.reciprocal %11 {approx = true} : vector<16x1xf32> -> vector<16x1xf32>
    %28 = arith.mulf %14, %27 : vector<16x1xf32>
    %29 = arith.mulf %28, %26 : vector<16x1xf32>
    %30 = math.tanh %29 : vector<16x1xf32>
    %cst_12 = arith.constant 1.000000e+00 : f32
    %31 = vector.broadcast %cst_12 : f32 to vector<16x1xf32>
    %32 = arith.mulf %31, %14 : vector<16x1xf32>
    %33 = tpu.reciprocal %32 {approx = true} : vector<16x1xf32> -> vector<16x1xf32>
    %34 = arith.mulf %30, %33 : vector<16x1xf32>
    %cst_13 = arith.constant 0.000000e+00 : f32
    %35 = vector.broadcast %cst_13 : f32 to vector<16x1xf32>
    %36 = arith.cmpf oeq, %8, %35 : vector<16x1xf32>
    %cst_14 = arith.constant 0.000000e+00 : f32
    %37 = vector.broadcast %cst_14 : f32 to vector<16x1xf32>
    %38 = arith.select %36, %37, %34 : vector<16x1xi1>, vector<16x1xf32>
    %39 = arith.mulf %38, %14 : vector<16x1xf32>
    %cst_15 = arith.constant 1.000000e-15 : f32
    %40 = vector.broadcast %cst_15 : f32 to vector<16x1xf32>
    %41 = arith.maximumf %39, %40 : vector<16x1xf32>
    %cst_16 = arith.constant 0.995999991 : f32
    %42 = vector.broadcast %cst_16 : f32 to vector<16x1xf32>
    %43 = arith.cmpf ogt, %41, %42 : vector<16x1xf32>
    %44 = tpu.reciprocal %41 {approx = true} : vector<16x1xf32> -> vector<16x1xf32>
    %cst_17 = arith.constant 0.995999991 : f32
    %45 = vector.broadcast %cst_17 : f32 to vector<16x1xf32>
    %46 = arith.mulf %45, %44 : vector<16x1xf32>
    %cst_18 = arith.constant 1.000000e+00 : f32
    %47 = vector.broadcast %cst_18 : f32 to vector<16x1xf32>
    %48 = arith.select %43, %46, %47 : vector<16x1xi1>, vector<16x1xf32>
    %49 = arith.mulf %38, %48 : vector<16x1xf32>
    %50 = vector.broadcast %49 : vector<16x1xf32> to vector<16x32xf32>
    %51 = arith.mulf %2, %50 : vector<16x32xf32>
    %c0_19 = arith.constant 0 : index
    %c0_20 = arith.constant 0 : index
    %52 = vector.load %arg2[%c0_19, %c0_20] : memref<16x16xf32, #tpu.memory_space<vmem>>, vector<16x16xf32>
    %cst_21 = arith.constant dense<0.000000e+00> : vector<16x32xf32>
    %53 = tpu.matmul %52, %51, %cst_21 {dimension_numbers = #tpu.dot_dimension_numbers<[1], [0], [0], [1], [0, 0, 1, 1], [], []>} : vector<16x16xf32>, vector<16x32xf32>, vector<16x32xf32> -> vector<16x32xf32>
    %54 = arith.mulf %53, %53 : vector<16x32xf32>
    %cst_22 = arith.constant dense<0.000000e+00> : vector<16xf32>
    %55 = vector.multi_reduction <add>, %54, %cst_22 [1] : vector<16x32xf32> to vector<16xf32>
    %56 = vector.shape_cast %55 : vector<16xf32> to vector<16x1xf32>
    %cst_23 = arith.constant 1.000000e-30 : f32
    %57 = vector.broadcast %cst_23 : f32 to vector<16x1xf32>
    %58 = arith.maximumf %56, %57 : vector<16x1xf32>
    %59 = math.sqrt %58 : vector<16x1xf32>
    %cst_24 = arith.constant 0.995999991 : f32
    %60 = vector.broadcast %cst_24 : f32 to vector<16x1xf32>
    %61 = arith.cmpf ogt, %59, %60 : vector<16x1xf32>
    %62 = tpu.reciprocal %59 {approx = true} : vector<16x1xf32> -> vector<16x1xf32>
    %cst_25 = arith.constant 0.995999991 : f32
    %63 = vector.broadcast %cst_25 : f32 to vector<16x1xf32>
    %64 = arith.mulf %63, %62 : vector<16x1xf32>
    %cst_26 = arith.constant 1.000000e+00 : f32
    %65 = vector.broadcast %cst_26 : f32 to vector<16x1xf32>
    %66 = arith.select %61, %64, %65 : vector<16x1xi1>, vector<16x1xf32>
    %67 = vector.broadcast %66 : vector<16x1xf32> to vector<16x32xf32>
    %68 = arith.mulf %53, %67 : vector<16x32xf32>
    %c0_27 = arith.constant 0 : index
    %c0_28 = arith.constant 0 : index
    %69 = vector.load %arg4[%c0_27, %c0_28] : memref<1x32xf32, #tpu.memory_space<vmem>>, vector<1x32xf32>
    %70 = vector.broadcast %69 : vector<1x32xf32> to vector<16x32xf32>
    %71 = arith.addf %68, %70 : vector<16x32xf32>
    %c0_29 = arith.constant 0 : index
    %c0_30 = arith.constant 0 : index
    %72 = vector.load %arg5[%c0_29, %c0_30] : memref<16x32xf32, #tpu.memory_space<vmem>>, vector<16x32xf32>
    tpu.vector_store %arg5[%c0_29, %c0_30], %71 {strides = array<i32>} : memref<16x32xf32, #tpu.memory_space<vmem>>, vector<16x32xf32>,
    return
  }
  func.func @transform_0(%arg0: i32) -> (i32, i32) {
    %c0_i32 = arith.constant 0 : i32
    %c0_i32_0 = arith.constant 0 : i32
    %c0_i32_1 = arith.constant 0 : i32
    return %c0_i32, %c0_i32_0 : i32, i32
  }
  func.func @transform_1(%arg0: i32) -> (i32, i32) {
    %c0_i32 = arith.constant 0 : i32
    %c0_i32_0 = arith.constant 0 : i32
    %c0_i32_1 = arith.constant 0 : i32
    return %c0_i32, %c0_i32_0 : i32, i32
  }
  func.func @transform_2(%arg0: i32) -> (i32, i32) {
    %c0_i32 = arith.constant 0 : i32
    %c0_i32_0 = arith.constant 0 : i32
    %c0_i32_1 = arith.constant 0 : i32
    return %c0_i32, %c0_i32_0 : i32, i32
  }
  func.func @transform_3(%arg0: i32) -> (i32, i32) {
    %c0_i32 = arith.constant 0 : i32
    %c0_i32_0 = arith.constant 0 : i32
    %c0_i32_1 = arith.constant 0 : i32
    return %c0_i32, %c0_i32_0 : i32, i32
  }
  func.func @transform_4(%arg0: i32) -> (i32, i32) {
    %c0_i32 = arith.constant 0 : i32
    %c0_i32_0 = arith.constant 0 : i32
    %c0_i32_1 = arith.constant 0 : i32
    return %c0_i32, %c0_i32_0 : i32, i32
  }
}

</mosaic_0001>

<llo_original>
// kernel: tpu_custom_call.1
$region0: #{tpu_custom_call.1}
  #allocation0 [shape = 'u32[]', space=smem, size = 0x4, offset = 0x4, fixed_abs, tag = 'smem constant byte address 0x4 - core index']
  #allocation1 [shape = 'u32[144,128]{1,0:T(1,128)}', space=vmem, size = 0x12000, scoped, tag = 'internal scratch']
  %s0 = inlined_call_operand.hbm [shape: f32[16,32], index: 0, kind: input, shape index: {}]
  %s1 = inlined_call_operand.hbm [shape: f32[16,16], index: 1, kind: input, shape index: {}]
  %s2 = inlined_call_operand.hbm [shape: f32[32,32], index: 2, kind: input, shape index: {}]
  %s3 = inlined_call_operand.vmem [shape: f32[1,32], index: 3, kind: input, shape index: {}]
  %s4 = inlined_call_operand.hbm [shape: f32[16,32], index: 4, kind: output, shape index: {}]
  %s5 = sld [smem:[#allocation0]]
  $region38: #{tpu_custom_call.1} parent=0
    _
  %s7 = ssub.s32 1, %s5
  %s8 = scalar_select 0, %s7, %s5
  $region1: #{tpu_custom_call.1} parent=0
    #allocation2 [shape = 'u8[8192]{0}', space=vmem, size = 0x2000, scoped, tag = 'input window, operand 0, single buffered']
    #allocation3 [shape = 's32[1]{0}', space=sflag, size = 0x4, scoped, tag = 'scoped memory for tpu_custom_call.1']
    #allocation4 [shape = 's32[1]{0}', space=sflag, size = 0x4, scoped, tag = 'scoped memory for tpu_custom_call.1']
    #allocation5 [shape = 'u8[8192]{0}', space=vmem, size = 0x2000, scoped, tag = 'input window, operand 1, single buffered']
    #allocation6 [shape = 's32[1]{0}', space=sflag, size = 0x4, scoped, tag = 'scoped memory for tpu_custom_call.1']
    #allocation7 [shape = 'u8[16384]{0}', space=vmem, size = 0x4000, scoped, tag = 'input window, operand 2, single buffered']
    #allocation8 [shape = 'u8[8192]{0}', space=vmem, size = 0x2000, scoped, tag = 'output window, operand 0, single buffered']
    %9 = vsyncpa [#allocation3], 0
    %10 = vsyncpa [#allocation6], 0
    %11 = vsyncpa [#allocation4], 0
    // Predicated region
    $region2: #{tpu_custom_call.1} parent=1 // pred_check
      _
    $region3: #{tpu_custom_call.1} parent=1 // pred_check_branch
      %13 = sbr.rel (0) target = $region5
    $region4: #{tpu_custom_call.1} parent=1 // pred_region
      %s15 = ssub.s32 256, 256
      %16 = vsyncadd [#allocation3], %s15
      %s17 = sshll.u32 [#allocation2], 4
      %s18 = int_to_ptr.vmem [resolvable:$true] %s17
      %23 = dma.hbm_to_vmem [thread:$0]  %s0, 256, %s18, [#allocation3], 128, 128, 8
    $region5: #{tpu_custom_call.1} parent=1 // pred_fallthru
      _
    // Predicated region
    $region6: #{tpu_custom_call.1} parent=1 // pred_check
      _
    $region7: #{tpu_custom_call.1} parent=1 // pred_check_branch
      %25 = sbr.rel (0) target = $region9
    $region8: #{tpu_custom_call.1} parent=1 // pred_region
      %s27 = ssub.s32 256, 256
      %28 = vsyncadd [#allocation6], %s27
      %s29 = sshll.u32 [#allocation5], 4
      %s30 = int_to_ptr.vmem [resolvable:$true] %s29
      %35 = dma.hbm_to_vmem [thread:$0]  %s1, 256, %s30, [#allocation6], 128, 128, 8
    $region9: #{tpu_custom_call.1} parent=1 // pred_fallthru
      _
    // Predicated region
    $region10: #{tpu_custom_call.1} parent=1 // pred_check
      _
    $region11: #{tpu_custom_call.1} parent=1 // pred_check_branch
      %37 = sbr.rel (0) target = $region13
    $region12: #{tpu_custom_call.1} parent=1 // pred_region
      %s39 = ssub.s32 512, 512
      %40 = vsyncadd [#allocation6], %s39
      %s41 = sshll.u32 [#allocation7], 4
      %s42 = int_to_ptr.vmem [resolvable:$true] %s41
      %47 = dma.hbm_to_vmem [thread:$0]  %s2, 512, %s42, [#allocation6], 128, 128, 8
    $region13: #{tpu_custom_call.1} parent=1 // pred_fallthru
      _
    // Predicated region
    $region14: #{tpu_custom_call.1} parent=1 // pred_check
      _
    $region15: #{tpu_custom_call.1} parent=1 // pred_check_branch
      %49 = sbr.rel (0) target = $region17
    $region16: #{tpu_custom_call.1} parent=1 // pred_region
      _
    $region17: #{tpu_custom_call.1} parent=1 // pred_fallthru
      _
    // Predicated region
    $region18: #{tpu_custom_call.1} parent=1 // pred_check
      _
    $region19: #{tpu_custom_call.1} parent=1 // pred_check_branch
      %51 = sbr.rel (0) target = $region21
    $region20: #{tpu_custom_call.1} parent=1 // pred_region
      %52 = dma.done [#allocation3], 256
    $region21: #{tpu_custom_call.1} parent=1 // pred_fallthru
      _
    // Predicated region
    $region22: #{tpu_custom_call.1} parent=1 // pred_check
      _
    $region23: #{tpu_custom_call.1} parent=1 // pred_check_branch
      %54 = sbr.rel (0) target = $region25
    $region24: #{tpu_custom_call.1} parent=1 // pred_region
      %55 = dma.done [#allocation6], 256
    $region25: #{tpu_custom_call.1} parent=1 // pred_fallthru
      _
    // Predicated region
    $region26: #{tpu_custom_call.1} parent=1 // pred_check
      _
    $region27: #{tpu_custom_call.1} parent=1 // pred_check_branch
      %57 = sbr.rel (0) target = $region29
    $region28: #{tpu_custom_call.1} parent=1 // pred_region
      %58 = dma.done [#allocation6], 512
    $region29: #{tpu_custom_call.1} parent=1 // pred_fallthru
      _
    %v59 = vld [vmem:[#allocation2] sm:$0xff]
    %v60 = vld [vmem:[#allocation2 + $0x8] sm:$0xff]
    %v61 = vld [vmem:[#allocation7] sm:$0xff]
    %v62 = vld [vmem:[#allocation7 + $0x8] sm:$0xff]
    %v63 = vld [vmem:[#allocation7 + $0x10] sm:$0xff]
    %v64 = vld [vmem:[#allocation7 + $0x18] sm:$0xff]
    %vm65 = vcmask 261120
    %v67 = vsel %vm65, %v59, 0
    %v70 = vsel %vm65, %v60, 0
    %72 = vmatprep.subr.mxu0 0.0
    %73 = vmatpush1.msra.mxu0 %v61
    %74 = vmatprep.subr.mxu0 0.0
    %75 = vmatpush1.msra.mxu0 %v62
    %76 = vmatprep.subr.mxu0 0.0
    %77 = vmatpush1.msra.mxu0 %v63
    %78 = vmatprep.subr.mxu0 0.0
    %79 = vmatpush1.msra.mxu0 %v64
    %80 = vmatprep.subr.mxu0 0.0
    %81 = vmatpush1.msra.mxu0 0.0
    %82 = vmatprep.subr.mxu0 0.0
    %83 = vmatpush1.msra.mxu0 0.0
    %84 = vmatprep.subr.mxu0 0.0
    %85 = vmatpush1.msra.mxu0 0.0
    %86 = vmatprep.subr.mxu0 0.0
    %87 = vmatpush1.msra.mxu0 0.0
    %88 = vmatprep.subr.mxu0 0.0
    %89 = vmatpush1.msra.mxu0 0.0
    %90 = vmatprep.subr.mxu0 0.0
    %91 = vmatpush1.msra.mxu0 0.0
    %92 = vmatprep.subr.mxu0 0.0
    %93 = vmatpush1.msra.mxu0 0.0
    %94 = vmatprep.subr.mxu0 0.0
    %95 = vmatpush1.msra.mxu0 0.0
    %96 = vmatprep.subr.mxu0 0.0
    %97 = vmatpush1.msra.mxu0 0.0
    %98 = vmatprep.subr.mxu0 0.0
    %99 = vmatpush1.msra.mxu0 0.0
    %100 = vmatprep.subr.mxu0 0.0
    %101 = vmatpush1.msra.mxu0 0.0
    %102 = vmatprep.subr.mxu0 0.0
    %103 = vmatpush1.msra.mxu0 0.0
    %104 = vmatprep.subr.mxu0 0.0
    %105 = vmatpush1.msra.mxu0 0.0
    %106 = vmatprep.subr.mxu0 0.0
    %107 = vmatpush1.msra.mxu0 0.0
    %108 = vmatprep.subr.mxu0 0.0
    %109 = vmatpush1.msra.mxu0 0.0
    %110 = vmatprep.subr.mxu0 0.0
    %111 = vmatpush1.msra.mxu0 0.0
    %112 = vmatprep.subr.mxu0 0.0
    %113 = vmatpush1.msra.mxu0 0.0
    %114 = vmatprep.subr.mxu0 0.0
    %115 = vmatpush1.msra.mxu0 0.0
    %116 = vmatprep.subr.mxu0 0.0
    %117 = vmatpush1.msra.mxu0 0.0
    %118 = vmatprep.subr.mxu0 0.0
    %119 = vmatpush1.msra.mxu0 0.0
    %120 = vmatprep.subr.mxu0 0.0
    %121 = vmatpush1.msra.mxu0 0.0
    %122 = vmatprep.subr.mxu0 0.0
    %123 = vmatpush1.msra.mxu0 0.0
    %124 = vmatprep.subr.mxu0 0.0
    %125 = vmatpush1.msra.mxu0 0.0
    %126 = vmatprep.subr.mxu0 0.0
    %127 = vmatpush1.msra.mxu0 0.0
    %128 = vmatprep.subr.mxu0 0.0
    %129 = vmatpush1.msra.mxu0 0.0
    %130 = vmatprep.subr.mxu0 0.0
    %131 = vmatpush1.msra.mxu0 0.0
    %132 = vmatprep.subr.mxu0 0.0
    %133 = vmatpush1.msra.mxu0 0.0
    %134 = vmatprep.subr.mxu0 0.0
    %135 = vmatpush1.msra.mxu0 0.0
    %136 = vmatprep.mubr.f32.mxu0 0.0
    %137 = vmatmul.mubr.f32.gmra.mrb[0].mxu0 %v67
    %v138 = vpop.f32.mrb[0].mxu0
    %v139 = vadd.f32 0.0, %v138
    %v140 = vpop.f32.mrb[0].mxu0
    %141 = vmatprep.mubr.f32.mxu0 0.0
    %142 = vmatmul.mubr.f32.gmra.mrb[0].mxu0 %v70
    %v143 = vpop.f32.mrb[0].mxu0
    %v144 = vadd.f32 0.0, %v143
    %v145 = vpop.f32.mrb[0].mxu0
    %146 = vdwg.mxu0
    %v147 = vmul.f32 %v59, %v59
    %v148 = vmul.f32 %v60, %v60
    %v149 = vsel %vm65, %v147, 0.0
    %150 = vadd.xlane.f32.xlu0 %v149
    %v151 = vpop.xlane.xlu0 %150
    %v152 = vsel %vm65, %v148, 0.0
    %153 = vadd.xlane.f32.xlu0 %v152
    %v154 = vpop.xlane.xlu0 %153
    %v155 = vmul.f32 %v139, %v139
    %v156 = vmul.f32 %v144, %v144
    %v157 = vsel %vm65, %v155, 0.0
    %158 = vadd.xlane.f32.xlu0 %v157
    %v159 = vpop.xlane.xlu0 %158
    %v160 = vsel %vm65, %v156, 0.0
    %161 = vadd.xlane.f32.xlu0 %v160
    %v162 = vpop.xlane.xlu0 %161
    %v163 = vmax.f32 %v151, 1e-30
    %v164 = vmax.f32 %v154, 1e-30
    %v165 = vrsqrt.pop %v163
    %v166 = vmul.f32 %v163, %v165
    %vm167 = vcmp.eq.f32.partialorder %v163, inf
    %v168 = vsel %vm167, %v163, %v166
    %vm169 = vcmp.eq.f32.partialorder %v163, 0.0
    %v170 = vand.u32 %v163, 2147483648
    %v171 = vsel %vm169, %v170, %v168
    %v172 = vrsqrt.pop %v164
    %v173 = vmul.f32 %v164, %v172
    %vm174 = vcmp.eq.f32.partialorder %v164, inf
    %v175 = vsel %vm174, %v164, %v173
    %vm176 = vcmp.eq.f32.partialorder %v164, 0.0
    %v177 = vand.u32 %v164, 2147483648
    %v178 = vsel %vm176, %v177, %v175
    %v179 = vmax.f32 %v159, 1e-30
    %v180 = vmax.f32 %v162, 1e-30
    %v181 = vrsqrt.pop %v179
    %v182 = vmul.f32 %v179, %v181
    %vm183 = vcmp.eq.f32.partialorder %v179, inf
    %v184 = vsel %vm183, %v179, %v182
    %vm185 = vcmp.eq.f32.partialorder %v179, 0.0
    %v186 = vand.u32 %v179, 2147483648
    %v187 = vsel %vm185, %v186, %v184
    %v188 = vrsqrt.pop %v180
    %v189 = vmul.f32 %v180, %v188
    %vm190 = vcmp.eq.f32.partialorder %v180, inf
    %v191 = vsel %vm190, %v180, %v189
    %vm192 = vcmp.eq.f32.partialorder %v180, 0.0
    %v193 = vand.u32 %v180, 2147483648
    %v194 = vsel %vm192, %v193, %v191
    %v195 = vmin.f32 %v171, 0.9999999
    %v196 = vmin.f32 %v178, 0.9999999
    %v197 = vadd.f32 %v195, 1.0
    %v198 = vadd.f32 %v196, 1.0
    %v199 = vsub.f32 1.0, %v195
    %v200 = vsub.f32 1.0, %v196
    %v201 = vrcp.pop %v199
    %v202 = vmul.f32 %v197, %v201
    %v203 = vrcp.pop %v200
    %v204 = vmul.f32 %v198, %v203
    %v205 = vlog2.pop %v202
    %v206 = vmul.f32 %v205, 0.6931472
    %v207 = vlog2.pop %v204
    %v208 = vmul.f32 %v207, 0.6931472
    %v209 = vmul.f32 %v206, 0.5
    %v210 = vmul.f32 %v208, 0.5
    %v211 = vrcp.pop %v171
    %v212 = vrcp.pop %v178
    %v213 = vmul.f32 %v187, %v211
    %v214 = vmul.f32 %v194, %v212
    %v215 = vmul.f32 %v213, %v209
    %v216 = vmul.f32 %v214, %v210
    %v217 = vtanh.pop %v215
    %v218 = vtanh.pop %v216
    %v219 = vrcp.pop %v187
    %v220 = vrcp.pop %v194
    %v221 = vmul.f32 %v217, %v219
    %v222 = vmul.f32 %v218, %v220
    %vm223 = vcmp.eq.f32.partialorder %v159, 0.0
    %vm224 = vcmp.eq.f32.partialorder %v162, 0.0
    %v225 = vsel %vm223, 0.0, %v221
    %v226 = vsel %vm224, 0.0, %v222
    %v227 = vmul.f32 %v225, %v187
    %v228 = vmul.f32 %v226, %v194
    %v229 = vmax.f32 %v227, 1e-15
    %v230 = vmax.f32 %v228, 1e-15
    %vm231 = vcmp.gt.f32.partialorder %v229, 0.996
    %vm232 = vcmp.gt.f32.partialorder %v230, 0.996
    %v233 = vrcp.pop %v229
    %v234 = vrcp.pop %v230
    %v235 = vmul.f32 %v233, 0.996
    %v236 = vmul.f32 %v234, 0.996
    %v237 = vsel %vm231, %v235, 1.0
    %v238 = vsel %vm232, %v236, 1.0
    %v239 = vmul.f32 %v225, %v237
    %v240 = vmul.f32 %v226, %v238
    %v241 = vmul.f32 %v139, %v239
    %v242 = vmul.f32 %v144, %v240
    %v243 = vld [vmem:[#allocation5] sm:$0xff]
    %v244 = vld [vmem:[#allocation5 + $0x8] sm:$0xff]
    %vm245 = vcmask 130048
    %v247 = vsel %vm245, %v243, 0
    %v250 = vsel %vm245, %v244, 0
    %252 = vmatprep.subr.mxu0 0.0
    %253 = vmatpush1.msra.mxu0 %v241
    %254 = vmatprep.subr.mxu0 0.0
    %255 = vmatpush1.msra.mxu0 %v242
    %256 = vmatprep.subr.mxu0 0.0
    %257 = vmatpush1.msra.mxu0 0.0
    %258 = vmatprep.subr.mxu0 0.0
    %259 = vmatpush1.msra.mxu0 0.0
    %260 = vmatprep.subr.mxu0 0.0
    %261 = vmatpush1.msra.mxu0 0.0
    %262 = vmatprep.subr.mxu0 0.0
    %263 = vmatpush1.msra.mxu0 0.0
    %264 = vmatprep.subr.mxu0 0.0
    %265 = vmatpush1.msra.mxu0 0.0
    %266 = vmatprep.subr.mxu0 0.0
    %267 = vmatpush1.msra.mxu0 0.0
    %268 = vmatprep.subr.mxu0 0.0
    %269 = vmatpush1.msra.mxu0 0.0
    %270 = vmatprep.subr.mxu0 0.0
    %271 = vmatpush1.msra.mxu0 0.0
    %272 = vmatprep.subr.mxu0 0.0
    %273 = vmatpush1.msra.mxu0 0.0
    %274 = vmatprep.subr.mxu0 0.0
    %275 = vmatpush1.msra.mxu0 0.0
    %276 = vmatprep.subr.mxu0 0.0
    %277 = vmatpush1.msra.mxu0 0.0
    %278 = vmatprep.subr.mxu0 0.0
    %279 = vmatpush1.msra.mxu0 0.0
    %280 = vmatprep.subr.mxu0 0.0
    %281 = vmatpush1.msra.mxu0 0.0
    %282 = vmatprep.subr.mxu0 0.0
    %283 = vmatpush1.msra.mxu0 0.0
    %284 = vmatprep.subr.mxu0 0.0
    %285 = vmatpush1.msra.mxu0 0.0
    %286 = vmatprep.subr.mxu0 0.0
    %287 = vmatpush1.msra.mxu0 0.0
    %288 = vmatprep.subr.mxu0 0.0
    %289 = vmatpush1.msra.mxu0 0.0
    %290 = vmatprep.subr.mxu0 0.0
    %291 = vmatpush1.msra.mxu0 0.0
    %292 = vmatprep.subr.mxu0 0.0
    %293 = vmatpush1.msra.mxu0 0.0
    %294 = vmatprep.subr.mxu0 0.0
    %295 = vmatpush1.msra.mxu0 0.0
    %296 = vmatprep.subr.mxu0 0.0
    %297 = vmatpush1.msra.mxu0 0.0
    %298 = vmatprep.subr.mxu0 0.0
    %299 = vmatpush1.msra.mxu0 0.0
    %300 = vmatprep.subr.mxu0 0.0
    %301 = vmatpush1.msra.mxu0 0.0
    %302 = vmatprep.subr.mxu0 0.0
    %303 = vmatpush1.msra.mxu0 0.0
    %304 = vmatprep.subr.mxu0 0.0
    %305 = vmatpush1.msra.mxu0 0.0
    %306 = vmatprep.subr.mxu0 0.0
    %307 = vmatpush1.msra.mxu0 0.0
    %308 = vmatprep.subr.mxu0 0.0
    %309 = vmatpush1.msra.mxu0 0.0
    %310 = vmatprep.subr.mxu0 0.0
    %311 = vmatpush1.msra.mxu0 0.0
    %312 = vmatprep.subr.mxu0 0.0
    %313 = vmatpush1.msra.mxu0 0.0
    %314 = vmatprep.subr.mxu0 0.0
    %315 = vmatpush1.msra.mxu0 0.0
    %316 = vmatprep.mubr.f32.mxu0 0.0
    %317 = vmatmul.mubr.f32.gmra.mrb[0].mxu0 %v247
    %v318 = vpop.f32.mrb[0].mxu0
    %v319 = vadd.f32 0.0, %v318
    %v320 = vpop.f32.mrb[0].mxu0
    %321 = vmatprep.mubr.f32.mxu0 0.0
    %322 = vmatmul.mubr.f32.gmra.mrb[0].mxu0 %v250
    %v323 = vpop.f32.mrb[0].mxu0
    %v324 = vadd.f32 0.0, %v323
    %v325 = vpop.f32.mrb[0].mxu0
    %326 = vdwg.mxu0
    %v327 = vmul.f32 %v319, %v319
    %v328 = vmul.f32 %v324, %v324
    %v329 = vsel %vm65, %v327, 0.0
    %330 = vadd.xlane.f32.xlu0 %v329
    %v331 = vpop.xlane.xlu0 %330
    %v332 = vsel %vm65, %v328, 0.0
    %333 = vadd.xlane.f32.xlu0 %v332
    %v334 = vpop.xlane.xlu0 %333
    %v335 = vmax.f32 %v331, 1e-30
    %v336 = vmax.f32 %v334, 1e-30
    %v337 = vrsqrt.pop %v335
    %v338 = vmul.f32 %v335, %v337
    %vm339 = vcmp.eq.f32.partialorder %v335, inf
    %v340 = vsel %vm339, %v335, %v338
    %vm341 = vcmp.eq.f32.partialorder %v335, 0.0
    %v342 = vand.u32 %v335, 2147483648
    %v343 = vsel %vm341, %v342, %v340
    %v344 = vrsqrt.pop %v336
    %v345 = vmul.f32 %v336, %v344
    %vm346 = vcmp.eq.f32.partialorder %v336, inf
    %v347 = vsel %vm346, %v336, %v345
    %vm348 = vcmp.eq.f32.partialorder %v336, 0.0
    %v349 = vand.u32 %v336, 2147483648
    %v350 = vsel %vm348, %v349, %v347
    %vm351 = vcmp.gt.f32.partialorder %v343, 0.996
    %vm352 = vcmp.gt.f32.partialorder %v350, 0.996
    %v353 = vrcp.pop %v343
    %v354 = vrcp.pop %v350
    %v355 = vmul.f32 %v353, 0.996
    %v356 = vmul.f32 %v354, 0.996
    %v357 = vsel %vm351, %v355, 1.0
    %v358 = vsel %vm352, %v356, 1.0
    %v359 = vmul.f32 %v319, %v357
    %v360 = vmul.f32 %v324, %v358
    %v361 = vld [vmem:[%s3] sm:$0x1]
    %v363 = vlaneseq
    %v364 = vshrl.u32 %v363, 7
    %v365 = vsub.s32 0, %v364
    %v366 = vrot.slane %v361, %v365
    %v368 = vadd.f32 %v359, %v366
    %v369 = vadd.f32 %v360, %v366
    %370 = vst.msk [vmem:[#allocation8] sm:$0xff] %vm65, %v368
    %371 = vst.msk [vmem:[#allocation8 + $0x8] sm:$0xff] %vm65, %v369
    // Predicated region
    $region30: #{tpu_custom_call.1} parent=1 // pred_check
      _
    $region31: #{tpu_custom_call.1} parent=1 // pred_check_branch
      %373 = sbr.rel (0) target = $region33
    $region32: #{tpu_custom_call.1} parent=1 // pred_region
      %s375 = ssub.s32 256, 256
      %376 = vsyncadd [#allocation4], %s375
      %s377 = sshll.u32 [#allocation8], 4
      %s378 = int_to_ptr.vmem [resolvable:$true] %s377
      %383 = dma.vmem_to_hbm [thread:$0]  %s378, 256, %s4, [#allocation4], 128, 128, 8
    $region33: #{tpu_custom_call.1} parent=1 // pred_fallthru
      _
    // Predicated region
    $region34: #{tpu_custom_call.1} parent=1 // pred_check
      _
    $region35: #{tpu_custom_call.1} parent=1 // pred_check_branch
      %385 = sbr.rel (0) target = $region37
    $region36: #{tpu_custom_call.1} parent=1 // pred_region
      %386 = dma.done [#allocation4], 256
    $region37: #{tpu_custom_call.1} parent=1 // pred_fallthru
      _
    %387 = vsyncpa [#allocation3], 1
    %388 = vsyncpa [#allocation6], 1
    %389 = vsyncpa [#allocation4], 1

</llo_original>
